<compile_context>
chip_gen: v5e
topology: v5e:2x2
jax: 0.10.0
libtpu: 0.0.40
codegen_flags: <defaults>
</compile_context>

<pallas_src>
import math

import jax
import jax.numpy as jnp
from jax import lax
from jax.experimental import pallas as pl
from jax.experimental.pallas import tpu as pltpu


_VMEM_LIMIT = 64 * 1024 * 1024  # scoped-VMEM cap; tiles below are sized well under it


def _choose_tile(dim, target):
    """Largest divisor of `dim` that is <= target (falls back to dim itself)."""
    if dim <= target:
        return dim
    for t in range(target, 0, -1):
        if dim % t == 0:
            return t
    return dim


# ------------------------- Tiled linear (matmul) kernel ------------------------- #
def _matmul_kernel(x_ref, w_ref, o_ref, acc_ref):
    @pl.when(pl.program_id(2) == 0)
    def _():
        acc_ref[...] = jnp.zeros_like(acc_ref)

    acc_ref[...] += jnp.dot(
        x_ref[...], w_ref[...], preferred_element_type=jnp.float32
    )

    @pl.when(pl.program_id(2) == pl.num_programs(2) - 1)
    def _():
        o_ref[...] = acc_ref[...].astype(o_ref.dtype)


def linear_pallas(x, w, *, tm=256, tn=256, tk=512):
    """x: [M, K] @ w: [K, N] -> [M, N] (bias-free), tiled & pipelined."""
    M, K = x.shape
    K2, N = w.shape
    assert K == K2
    tm = _choose_tile(M, tm)
    tn = _choose_tile(N, tn)
    tk = _choose_tile(K, tk)
    grid = (M // tm, N // tn, K // tk)

    cost = pl.CostEstimate(
        flops=2 * M * N * K,
        transcendentals=0,
        bytes_accessed=(M * K + K * N + M * N) * x.dtype.itemsize,
    )
    return pl.pallas_call(
        _matmul_kernel,
        out_shape=jax.ShapeDtypeStruct((M, N), x.dtype),
        grid=grid,
        in_specs=[
            pl.BlockSpec((tm, tk), lambda i, j, k: (i, k)),
            pl.BlockSpec((tk, tn), lambda i, j, k: (k, j)),
        ],
        out_specs=pl.BlockSpec((tm, tn), lambda i, j, k: (i, j)),
        scratch_shapes=[pltpu.VMEM((tm, tn), jnp.float32)],
        compiler_params=pltpu.CompilerParams(
            dimension_semantics=("parallel", "parallel", "arbitrary"),
            vmem_limit_bytes=_VMEM_LIMIT,
        ),
        cost_estimate=cost,
    )(x, w)


# ------------------------------- Attention kernel ------------------------------- #
def _attention_kernel(q_ref, k_ref, v_ref, o_ref, w_ref):
    # q_ref: [tq, d_k]; k_ref/v_ref: [S, d_k]; o_ref: [tq, d_k]; w_ref: [tq, S]
    d_k = q_ref.shape[-1]

    # Fold the 1/sqrt(d_k) scale into q: tq*d_k multiplies instead of tq*S.
    q = q_ref[...].astype(jnp.float32) * (1.0 / math.sqrt(d_k))
    k = k_ref[...].astype(jnp.float32)

    # scores = q @ k^T without materialising a transposed K tile:
    # contract over d_k on both operands directly.
    scores = lax.dot_general(
        q, k,
        dimension_numbers=(((1,), (1,)), ((), ())),
        preferred_element_type=jnp.float32,
    )

    # Numerically stable softmax over the key axis.
    m = jnp.max(scores, axis=-1, keepdims=True)
    e = jnp.exp(scores - m)
    denom = jnp.sum(e, axis=-1, keepdims=True)
    # approx=False keeps the returned attention weights tight to the reference
    # (1e-5); use approx=True (EUP vrcp) when the weights are not externally
    # consumed.
    attn_w = e * pl.reciprocal(denom, approx=False)

    # TODO(synk): training-mode dropout on attn_w (pltpu.prng_random_bits mask).
    w_ref[...] = attn_w.astype(w_ref.dtype)
    o_ref[...] = jnp.dot(
        attn_w.astype(v_ref.dtype), v_ref[...],
        preferred_element_type=jnp.float32,
    ).astype(o_ref.dtype)


def scaled_dot_product_attention_pallas(qh, kh, vh, *, tq=256):
    """qh/kh/vh: [B, H, S, d_k] -> (out [B, H, S, d_k], weights [B, H, S, S])."""
    B, H, S, d_k = qh.shape
    tq = _choose_tile(S, tq)
    grid = (B, H, S // tq)

    q_spec = pl.BlockSpec((None, None, tq, d_k), lambda b, h, i: (b, h, i, 0))
    kv_spec = pl.BlockSpec((None, None, S, d_k), lambda b, h, i: (b, h, 0, 0))
    o_spec = pl.BlockSpec((None, None, tq, d_k), lambda b, h, i: (b, h, i, 0))
    w_spec = pl.BlockSpec((None, None, tq, S), lambda b, h, i: (b, h, i, 0))

    itemsize = qh.dtype.itemsize
    cost = pl.CostEstimate(
        flops=2 * 2 * B * H * S * S * d_k,
        transcendentals=B * H * S * S,
        bytes_accessed=(4 * B * H * S * d_k + B * H * S * S) * itemsize,
    )
    out, weights = pl.pallas_call(
        _attention_kernel,
        out_shape=(
            jax.ShapeDtypeStruct((B, H, S, d_k), qh.dtype),
            jax.ShapeDtypeStruct((B, H, S, S), qh.dtype),
        ),
        grid=grid,
        in_specs=[q_spec, kv_spec, kv_spec],
        out_specs=(o_spec, w_spec),
        compiler_params=pltpu.CompilerParams(
            # B/H axes are independent (megacore can shard them); the q-tile
            # axis is innermost and "arbitrary" so the K/V blocks (whose block
            # index does not change along it) are DMA'd once per (b, h).
            dimension_semantics=("parallel", "parallel", "arbitrary"),
            vmem_limit_bytes=_VMEM_LIMIT,
        ),
        cost_estimate=cost,
    )(qh, kh, vh)
    return out, weights


# ---------------------- Output projection (head-merge fused) -------------------- #
def _oproj_kernel(a_ref, w_ref, o_ref, acc_ref):
    h = pl.program_id(3)

    @pl.when(h == 0)
    def _():
        acc_ref[...] = jnp.zeros_like(acc_ref)

    acc_ref[...] += jnp.dot(
        a_ref[...], w_ref[...], preferred_element_type=jnp.float32
    )

    @pl.when(h == pl.num_programs(3) - 1)
    def _():
        o_ref[...] = acc_ref[...].astype(o_ref.dtype)


def output_projection_pallas(attn_heads, wo, *, tm=256, tn=256):
    """attn_heads: [B, H, S, d_k]; wo: [H*d_k, D_out] -> [B, S, D_out].

    out[b, s, :] = sum_h attn_heads[b, h, s, :] @ wo[h*d_k:(h+1)*d_k, :]
    i.e. the head-merge transpose is fused into the W_O matmul as a reduction
    over the head grid axis; the output store is lane-dense (tn lanes).
    """
    B, H, S, d_k = attn_heads.shape
    D_in, D_out = wo.shape
    assert D_in == H * d_k
    wo_r = wo.reshape(H, d_k, D_out)  # row-contiguous: free reshape

    tm = _choose_tile(S, tm)
    tn = _choose_tile(D_out, tn)
    grid = (B, S // tm, D_out // tn, H)

    cost = pl.CostEstimate(
        flops=2 * B * S * D_in * D_out,
        transcendentals=0,
        bytes_accessed=(B * H * S * d_k + D_in * D_out + B * S * D_out)
        * attn_heads.dtype.itemsize,
    )
    return pl.pallas_call(
        _oproj_kernel,
        out_shape=jax.ShapeDtypeStruct((B, S, D_out), attn_heads.dtype),
        grid=grid,
        in_specs=[
            pl.BlockSpec((None, None, tm, d_k), lambda b, i, j, h: (b, h, i, 0)),
            pl.BlockSpec((None, d_k, tn), lambda b, i, j, h: (h, 0, j)),
        ],
        out_specs=pl.BlockSpec((None, tm, tn), lambda b, i, j, h: (b, i, j)),
        scratch_shapes=[pltpu.VMEM((tm, tn), jnp.float32)],
        compiler_params=pltpu.CompilerParams(
            dimension_semantics=("parallel", "parallel", "parallel", "arbitrary"),
            vmem_limit_bytes=_VMEM_LIMIT,
        ),
        cost_estimate=cost,
    )(attn_heads, wo_r)


# --------------------------------- Module wrapper -------------------------------- #
def multi_head_attention(q, k, v, wq, wk, wv, wo, num_heads):
    """q, k, v: [B, S, d_model]; wq/wk/wv/wo: [d_model, d_model] (x @ W form)."""
    B, S, D = q.shape
    assert D % num_heads == 0
    d_k = D // num_heads

    if (q is k) and (k is v):
        # Self-attention: one fused matmul against [D, 3D] so each activation
        # tile is read from HBM once and drives all three projections.
        wqkv = jnp.concatenate([wq, wk, wv], axis=1)            # [D, 3D]
        qkv = linear_pallas(q.reshape(B * S, D), wqkv)          # [B*S, 3D]
        qp = qkv[:, :D].reshape(B, S, D)
        kp = qkv[:, D:2 * D].reshape(B, S, D)
        vp = qkv[:, 2 * D:].reshape(B, S, D)
    else:
        qp = linear_pallas(q.reshape(B * S, D), wq).reshape(B, S, D)
        kp = linear_pallas(k.reshape(B * S, D), wk).reshape(B, S, D)
        vp = linear_pallas(v.reshape(B * S, D), wv).reshape(B, S, D)

    # split heads: [B, S, D] -> [B, H, S, d_k]
    # TODO(synk): fold the head-split layout into the projection out_specs /
    # attention in_specs (needs d_k-wide lane blocks, practical when d_k >= 128).
    qh = qp.reshape(B, S, num_heads, d_k).transpose(0, 2, 1, 3)
    kh = kp.reshape(B, S, num_heads, d_k).transpose(0, 2, 1, 3)
    vh = vp.reshape(B, S, num_heads, d_k).transpose(0, 2, 1, 3)

    attn_out, attn_weights = scaled_dot_product_attention_pallas(qh, kh, vh)

    # TODO(synk): training-mode dropout (attention weights and after W_O).
    # Output projection consumes the head-major layout directly (merge fused).
    out = output_projection_pallas(attn_out, wo)
    return out, attn_weights


# --------------------------------- Reference (JAX) -------------------------------- #
def _reference(q, k, v, wq, wk, wv, wo, num_heads):
    B, S, D = q.shape
    d_k = D // num_heads
    qp = (q.reshape(B * S, D) @ wq).reshape(B, S, num_heads, d_k).transpose(0, 2, 1, 3)
    kp = (k.reshape(B * S, D) @ wk).reshape(B, S, num_heads, d_k).transpose(0, 2, 1, 3)
    vp = (v.reshape(B * S, D) @ wv).reshape(B, S, num_heads, d_k).transpose(0, 2, 1, 3)
    scores = jnp.einsum("bhqd,bhkd->bhqk", qp, kp) / math.sqrt(d_k)
    w = jax.nn.softmax(scores, axis=-1)
    o = jnp.einsum("bhqk,bhkd->bhqd", w, vp)
    o = o.transpose(0, 2, 1, 3).reshape(B, S, D)
    return (o.reshape(B * S, D) @ wo).reshape(B, S, D), w


if __name__ == "__main__":
    B, S, D, H = 2, 8, 32, 4

    key = jax.random.PRNGKey(0)
    kx, kq, kk_key, kv_key, k1, k2, k3, k4 = jax.random.split(key, 8)

    scale = 1.0 / math.sqrt(D)
    # nn.Linear(d_model, d_model, bias=False): y = x @ W.T; we generate the
    # (in, out) matrices directly so the kernels compute x @ W.
    wq = jax.random.normal(k1, (D, D), dtype=jnp.float32) * scale
    wk = jax.random.normal(k2, (D, D), dtype=jnp.float32) * scale
    wv = jax.random.normal(k3, (D, D), dtype=jnp.float32) * scale
    wo = jax.random.normal(k4, (D, D), dtype=jnp.float32) * scale

    # 1) BERT-style self-attention (q is k is v): fused QKV projection path.
    x = jax.random.normal(kx, (B, S, D), dtype=jnp.float32)
    out, attn_w = multi_head_attention(x, x, x, wq, wk, wv, wo, num_heads=H)
    out = jax.block_until_ready(out)
    attn_w = jax.block_until_ready(attn_w)

    ref_out, ref_w = _reference(x, x, x, wq, wk, wv, wo, num_heads=H)
    assert out.shape == (B, S, D) and attn_w.shape == (B, H, S, S)
    assert jnp.allclose(out, ref_out, atol=1e-4, rtol=1e-4)
    assert jnp.allclose(attn_w, ref_w, atol=1e-5, rtol=1e-5)

    # 2) Cross-attention path (distinct q / k / v projections).
    q_in = jax.random.normal(kq, (B, S, D), dtype=jnp.float32)
    k_in = jax.random.normal(kk_key, (B, S, D), dtype=jnp.float32)
    v_in = jax.random.normal(kv_key, (B, S, D), dtype=jnp.float32)
    out2, attn_w2 = multi_head_attention(q_in, k_in, v_in, wq, wk, wv, wo, num_heads=H)
    out2 = jax.block_until_ready(out2)
    attn_w2 = jax.block_until_ready(attn_w2)

    ref_out2, ref_w2 = _reference(q_in, k_in, v_in, wq, wk, wv, wo, num_heads=H)
    assert jnp.allclose(out2, ref_out2, atol=1e-4, rtol=1e-4)
    assert jnp.allclose(attn_w2, ref_w2, atol=1e-5, rtol=1e-5)

    print("KERNEL_OK")
</pallas_src>

<mosaic_0001>
module attributes {stable_mosaic.version = 11 : i64} {
  func.func @_matmul_kernel(%arg0: i32, %arg1: i32, %arg2: i32, %arg3: memref<16x32xf32, #tpu.memory_space<vmem>>, %arg4: memref<32x96xf32, #tpu.memory_space<vmem>>, %arg5: memref<16x96xf32, #tpu.memory_space<vmem>>, %arg6: memref<16x96xf32, #tpu.memory_space<vmem>>) attributes {dimension_semantics = [#tpu.dimension_semantics<parallel>, #tpu.dimension_semantics<parallel>, #tpu.dimension_semantics<arbitrary>], iteration_bounds = array<i64: 1, 1, 1>, scalar_prefetch = 0 : i64, scratch_operands = 1 : i64, tpu.core_type = #tpu.core_type<tc>, window_params = [{transform_indices = @transform_0, window_bounds = array<i64: 16, 32>}, {transform_indices = @transform_1, window_bounds = array<i64: 32, 96>}, {transform_indices = @transform_2, window_bounds = array<i64: 16, 96>}]} {
    %c0_i32 = arith.constant 0 : i32
    %0 = arith.cmpi eq, %arg2, %c0_i32 : i32
    %1 = arith.extui %0 : i1 to i32
    %c0_i32_0 = arith.constant 0 : i32
    %2 = arith.cmpi ne, %1, %c0_i32_0 : i32
    scf.if %2 {
      %cst_10 = arith.constant 0.000000e+00 : f32
      %12 = vector.broadcast %cst_10 : f32 to vector<16x96xf32>
      %c0_11 = arith.constant 0 : index
      %c0_12 = arith.constant 0 : index
      %13 = vector.load %arg6[%c0_11, %c0_12] : memref<16x96xf32, #tpu.memory_space<vmem>>, vector<16x96xf32>
      tpu.vector_store %arg6[%c0_11, %c0_12], %12 {strides = array<i32>} : memref<16x96xf32, #tpu.memory_space<vmem>>, vector<16x96xf32>,
    } else {
    }
    %c0 = arith.constant 0 : index
    %c0_1 = arith.constant 0 : index
    %3 = vector.load %arg6[%c0, %c0_1] : memref<16x96xf32, #tpu.memory_space<vmem>>, vector<16x96xf32>
    %c0_2 = arith.constant 0 : index
    %c0_3 = arith.constant 0 : index
    %4 = vector.load %arg3[%c0_2, %c0_3] : memref<16x32xf32, #tpu.memory_space<vmem>>, vector<16x32xf32>
    %c0_4 = arith.constant 0 : index
    %c0_5 = arith.constant 0 : index
    %5 = vector.load %arg4[%c0_4, %c0_5] : memref<32x96xf32, #tpu.memory_space<vmem>>, vector<32x96xf32>
    %cst = arith.constant dense<0.000000e+00> : vector<16x96xf32>
    %6 = tpu.matmul %4, %5, %cst {dimension_numbers = #tpu.dot_dimension_numbers<[1], [0], [0], [1], [0, 0, 1, 1], [], []>} : vector<16x32xf32>, vector<32x96xf32>, vector<16x96xf32> -> vector<16x96xf32>
    %7 = arith.addf %3, %6 : vector<16x96xf32>
    %c0_6 = arith.constant 0 : index
    %c0_7 = arith.constant 0 : index
    %8 = vector.load %arg6[%c0_6, %c0_7] : memref<16x96xf32, #tpu.memory_space<vmem>>, vector<16x96xf32>
    tpu.vector_store %arg6[%c0_6, %c0_7], %7 {strides = array<i32>} : memref<16x96xf32, #tpu.memory_space<vmem>>, vector<16x96xf32>,
    %c0_i32_8 = arith.constant 0 : i32
    %9 = arith.cmpi eq, %arg2, %c0_i32_8 : i32
    %10 = arith.extui %9 : i1 to i32
    %c0_i32_9 = arith.constant 0 : i32
    %11 = arith.cmpi ne, %10, %c0_i32_9 : i32
    scf.if %11 {
      %c0_10 = arith.constant 0 : index
      %c0_11 = arith.constant 0 : index
      %12 = vector.load %arg6[%c0_10, %c0_11] : memref<16x96xf32, #tpu.memory_space<vmem>>, vector<16x96xf32>
      %c0_12 = arith.constant 0 : index
      %c0_13 = arith.constant 0 : index
      %13 = vector.load %arg5[%c0_12, %c0_13] : memref<16x96xf32, #tpu.memory_space<vmem>>, vector<16x96xf32>
      tpu.vector_store %arg5[%c0_12, %c0_13], %12 {strides = array<i32>} : memref<16x96xf32, #tpu.memory_space<vmem>>, vector<16x96xf32>,
    } else {
    }
    return
  }
  func.func @transform_0(%arg0: i32, %arg1: i32, %arg2: i32) -> (i32, i32) {
    %c0_i32 = arith.constant 0 : i32
    return %arg0, %arg2 : i32, i32
  }
  func.func @transform_1(%arg0: i32, %arg1: i32, %arg2: i32) -> (i32, i32) {
    %c0_i32 = arith.constant 0 : i32
    return %arg2, %arg1 : i32, i32
  }
  func.func @transform_2(%arg0: i32, %arg1: i32, %arg2: i32) -> (i32, i32) {
    %c0_i32 = arith.constant 0 : i32
    return %arg0, %arg1 : i32, i32
  }
}

</mosaic_0001>

<llo_original>
// kernel: tpu_custom_call.1
$region0: #{tpu_custom_call.1}
  #allocation0 [shape = 'u32[]', space=smem, size = 0x4, offset = 0x4, fixed_abs, tag = 'smem constant byte address 0x4 - core index']
  #allocation1 [shape = 'u32[72,128]{1,0:T(1,128)}', space=vmem, size = 0x9000, scoped, tag = 'internal scratch']
  #allocation2 [shape = 'f32[16,96]{1,0:T(8,128)}', space=vmem, size = 0x2000, scoped, tag = 'scratch operand']
  %s0 = inlined_call_operand.hbm [shape: f32[16,32], index: 0, kind: input, shape index: {}]
  %s1 = inlined_call_operand.hbm [shape: f32[32,96], index: 1, kind: input, shape index: {}]
  %s2 = inlined_call_operand.hbm [shape: f32[16,96], index: 2, kind: output, shape index: {}]
  %s3 = sld [smem:[#allocation0]]
  $region34: #{tpu_custom_call.1} parent=0
    _
  %s5 = ssub.s32 1, %s3
  %s6 = scalar_select 0, %s5, %s3
  $region1: #{tpu_custom_call.1} parent=0
    #allocation3 [shape = 'u8[8192]{0}', space=vmem, size = 0x2000, scoped, tag = 'input window, operand 0, single buffered']
    #allocation4 [shape = 's32[1]{0}', space=sflag, size = 0x4, scoped, tag = 'scoped memory for tpu_custom_call.1']
    #allocation5 [shape = 's32[1]{0}', space=sflag, size = 0x4, scoped, tag = 'scoped memory for tpu_custom_call.1']
    #allocation6 [shape = 'u8[16384]{0}', space=vmem, size = 0x4000, scoped, tag = 'input window, operand 1, single buffered']
    #allocation7 [shape = 's32[1]{0}', space=sflag, size = 0x4, scoped, tag = 'scoped memory for tpu_custom_call.1']
    #allocation8 [shape = 'u8[8192]{0}', space=vmem, size = 0x2000, scoped, tag = 'output window, operand 0, single buffered']
    %7 = vsyncpa [#allocation4], 0
    %8 = vsyncpa [#allocation7], 0
    %9 = vsyncpa [#allocation5], 0
    // Predicated region
    $region2: #{tpu_custom_call.1} parent=1 // pred_check
      _
    $region3: #{tpu_custom_call.1} parent=1 // pred_check_branch
      %11 = sbr.rel (0) target = $region5
    $region4: #{tpu_custom_call.1} parent=1 // pred_region
      %13 = vsyncadd [#allocation4], 0
      %s14 = sshll.u32 %s0, 4
      %s15 = int_to_ptr.hbm [resolvable:$true] %s14
      %s16 = sshll.u32 [#allocation3], 4
      %s17 = int_to_ptr.vmem [resolvable:$true] %s16
      %22 = dma.hbm_to_vmem [thread:$0]  %s15, 256, %s17, [#allocation4], 128, 128, 8
    $region5: #{tpu_custom_call.1} parent=1 // pred_fallthru
      _
    // Predicated region
    $region6: #{tpu_custom_call.1} parent=1 // pred_check
      _
    $region7: #{tpu_custom_call.1} parent=1 // pred_check_branch
      %24 = sbr.rel (0) target = $region9
    $region8: #{tpu_custom_call.1} parent=1 // pred_region
      %26 = vsyncadd [#allocation7], 0
      %s27 = sshll.u32 %s1, 4
      %s28 = int_to_ptr.hbm [resolvable:$true] %s27
      %s29 = sshll.u32 [#allocation6], 4
      %s30 = int_to_ptr.vmem [resolvable:$true] %s29
      %35 = dma.hbm_to_vmem [thread:$0]  %s28, 512, %s30, [#allocation7], 128, 128, 8
    $region9: #{tpu_custom_call.1} parent=1 // pred_fallthru
      _
    // Predicated region
    $region10: #{tpu_custom_call.1} parent=1 // pred_check
      _
    $region11: #{tpu_custom_call.1} parent=1 // pred_check_branch
      %37 = sbr.rel (0) target = $region13
    $region12: #{tpu_custom_call.1} parent=1 // pred_region
      %39 = dma.done [#allocation4], 256
    $region13: #{tpu_custom_call.1} parent=1 // pred_fallthru
      _
    // Predicated region
    $region14: #{tpu_custom_call.1} parent=1 // pred_check
      _
    $region15: #{tpu_custom_call.1} parent=1 // pred_check_branch
      %41 = sbr.rel (0) target = $region17
    $region16: #{tpu_custom_call.1} parent=1 // pred_region
      %43 = dma.done [#allocation7], 512
    $region17: #{tpu_custom_call.1} parent=1 // pred_fallthru
      _
    %p44 = scmp.eq.s32.totalorder 0, 0
    // Predicated region
    $region18: #{tpu_custom_call.1} parent=1 // pred_check
      %p45 = pneg %p44
    $region19: #{tpu_custom_call.1} parent=1 // pred_check_branch
      %47 = sbr.rel (%p45) target = $region21
    $region20: #{tpu_custom_call.1} parent=1 // pred_region
      %vm48 = vcmask 785408
      %49 = vst.msk [vmem:[#allocation2] sm:$0xff] %vm48, 0.0
      %50 = vst.msk [vmem:[#allocation2 + $0x8] sm:$0xff] %vm48, 0.0
    $region21: #{tpu_custom_call.1} parent=1 // pred_fallthru
      _
    %v51 = vld [vmem:[#allocation2] sm:$0xff]
    %v52 = vld [vmem:[#allocation2 + $0x8] sm:$0xff]
    %v53 = vld [vmem:[#allocation3] sm:$0xff]
    %v54 = vld [vmem:[#allocation3 + $0x8] sm:$0xff]
    %v55 = vld [vmem:[#allocation6] sm:$0xff]
    %v56 = vld [vmem:[#allocation6 + $0x8] sm:$0xff]
    %v57 = vld [vmem:[#allocation6 + $0x10] sm:$0xff]
    %v58 = vld [vmem:[#allocation6 + $0x18] sm:$0xff]
    %vm59 = vcmask 261120
    %v61 = vsel %vm59, %v53, 0
    %v64 = vsel %vm59, %v54, 0
    %66 = vmatpush.msra.mxu0 0.0
    %67 = vmatpush.msra.mxu0 0.0
    %68 = vmatpush.msra.mxu0 0.0
    %69 = vmatpush.msra.mxu0 0.0
    %70 = vmatpush.msra.mxu0 0.0
    %71 = vmatpush.msra.mxu0 0.0
    %72 = vmatpush.msra.mxu0 0.0
    %73 = vmatpush.msra.mxu0 0.0
    %74 = vmatpush.msra.mxu0 0.0
    %75 = vmatpush.msra.mxu0 0.0
    %76 = vmatpush.msra.mxu0 0.0
    %77 = vmatpush.msra.mxu0 0.0
    %78 = vmatpush.msra.mxu0 %v58
    %79 = vmatpush.msra.mxu0 %v57
    %80 = vmatpush.msra.mxu0 %v56
    %81 = vmatpush.msra.mxu0 %v55
    %82 = vmatmul.f32.gmra.mxu0 %v61
    %v83 = vpop.f32.mrf.mxu0
    %v84 = vadd.f32 0.0, %v83
    %85 = vmatmul.f32.gmra.mxu0 %v64
    %v86 = vpop.f32.mrf.mxu0
    %v87 = vadd.f32 0.0, %v86
    %88 = vdwg.mxu0
    %v89 = vadd.f32 %v51, %v84
    %v90 = vadd.f32 %v52, %v87
    %vm91 = vcmask 785408
    %92 = vst.msk [vmem:[#allocation2] sm:$0xff] %vm91, %v89
    %93 = vst.msk [vmem:[#allocation2 + $0x8] sm:$0xff] %vm91, %v90
    // Predicated region
    $region22: #{tpu_custom_call.1} parent=1 // pred_check
      %p94 = pneg %p44
    $region23: #{tpu_custom_call.1} parent=1 // pred_check_branch
      %96 = sbr.rel (%p94) target = $region25
    $region24: #{tpu_custom_call.1} parent=1 // pred_region
      %v97 = vld [vmem:[#allocation2] sm:$0xff]
      %v98 = vld [vmem:[#allocation2 + $0x8] sm:$0xff]
      %99 = vst.msk [vmem:[#allocation8] sm:$0xff] %vm91, %v97
      %100 = vst.msk [vmem:[#allocation8 + $0x8] sm:$0xff] %vm91, %v98
    $region25: #{tpu_custom_call.1} parent=1 // pred_fallthru
      _
    // Predicated region
    $region26: #{tpu_custom_call.1} parent=1 // pred_check
      _
    $region27: #{tpu_custom_call.1} parent=1 // pred_check_branch
      %102 = sbr.rel (0) target = $region29
    $region28: #{tpu_custom_call.1} parent=1 // pred_region
      %104 = vsyncadd [#allocation5], 0
      %s105 = sshll.u32 [#allocation8], 4
      %s106 = int_to_ptr.vmem [resolvable:$true] %s105
      %s107 = sshll.u32 %s2, 4
      %s108 = int_to_ptr.hbm [resolvable:$true] %s107
      %113 = dma.vmem_to_hbm [thread:$0]  %s106, 256, %s108, [#allocation5], 128, 128, 8
    $region29: #{tpu_custom_call.1} parent=1 // pred_fallthru
      _
    // Predicated region
    $region30: #{tpu_custom_call.1} parent=1 // pred_check
      _
    $region31: #{tpu_custom_call.1} parent=1 // pred_check_branch
      %115 = sbr.rel (0) target = $region33
    $region32: #{tpu_custom_call.1} parent=1 // pred_region
      %117 = dma.done [#allocation5], 256
    $region33: #{tpu_custom_call.1} parent=1 // pred_fallthru
      _
    %118 = vsyncpa [#allocation4], 1
    %119 = vsyncpa [#allocation7], 1
    %120 = vsyncpa [#allocation5], 1

</llo_original>
